<compile_context>
chip_gen: v7x
topology: tpu7x:2x2x1
jax: 0.10.0
libtpu: 0.0.40
codegen_flags: <defaults>
</compile_context>

<pallas_src>
import math

import jax
import jax.numpy as jnp
from jax.experimental import pallas as pl
from jax.experimental.pallas import tpu as pltpu


def _cdiv(a, b):
    return -(-a // b)


def _round_up(x, m):
    return _cdiv(x, m) * m


# ---------------------------------------------------------------------------
# Kernels
# ---------------------------------------------------------------------------
def _mlp_probs(x_ref, w1_ref, b1_ref, w2_ref, b2_ref, w3_ref, b3_ref):
    """Shared body: returns sigmoid probabilities as a (tb, 1) f32 column."""
    x = x_ref[...].astype(jnp.bfloat16)            # f32 -> bf16 cast on the VPU

    # lin1 (MXU bf16 in / f32 acc) + dropout(identity) + ReLU (f32)
    h1 = jnp.dot(x, w1_ref[...], preferred_element_type=jnp.float32) + b1_ref[...]
    h1 = jnp.maximum(h1, 0.0)

    # lin2 (MXU bf16 in / f32 acc) + dropout(identity) + ReLU (f32)
    h2 = jnp.dot(h1.astype(jnp.bfloat16), w2_ref[...],
                 preferred_element_type=jnp.float32) + b2_ref[...]
    h2 = jnp.maximum(h2, 0.0)

    # lin3: output width 1 -> VPU multiply + XLU lane reduce (no MXU push for N=1).
    logits = jnp.sum(h2 * w3_ref[...], axis=-1, keepdims=True) + b3_ref[...]  # (tb, 1)
    return jax.nn.sigmoid(logits)


def _disc_kernel_lane(x_ref, w1_ref, b1_ref, w2_ref, b2_ref, w3_ref, b3_ref, o_ref):
    probs = _mlp_probs(x_ref, w1_ref, b1_ref, w2_ref, b2_ref, w3_ref, b3_ref)
    # Tiny relayout (tb f32 values) so the output block is lane-dense: unmasked
    # stores + contiguous HBM writeback instead of tb/8 masked vst.msk stores.
    o_ref[...] = probs.reshape(o_ref.shape)        # (tb, 1) -> (1, 1, tb)


def _disc_kernel_col(x_ref, w1_ref, b1_ref, w2_ref, b2_ref, w3_ref, b3_ref, o_ref):
    # Fallback layout: sublane-major (tb, 1) column output.
    o_ref[...] = _mlp_probs(x_ref, w1_ref, b1_ref, w2_ref, b2_ref, w3_ref, b3_ref)


# ---------------------------------------------------------------------------
# Parameter construction / one-time prep (hoisted out of the per-step forward)
# ---------------------------------------------------------------------------
def init_params(key, n_code, n_hidden):
    """Deterministic init mimicking nn.Linear's U(-1/sqrt(fan_in), 1/sqrt(fan_in))."""
    ks = jax.random.split(key, 6)

    def lin(kw, kb, fan_in, fan_out):
        bound = 1.0 / math.sqrt(fan_in)
        w = jax.random.uniform(kw, (fan_in, fan_out), jnp.float32, -bound, bound)
        b = jax.random.uniform(kb, (1, fan_out), jnp.float32, -bound, bound)
        return w, b

    w1, b1 = lin(ks[0], ks[1], n_code, n_hidden)
    w2, b2 = lin(ks[2], ks[3], n_hidden, n_hidden)
    w3, b3 = lin(ks[4], ks[5], n_hidden, 1)
    return {"w1": w1, "b1": b1, "w2": w2, "b2": b2, "w3": w3, "b3": b3}


def prepare_params(params):
    """One-time pad/cast of the weights (do NOT call per forward step).

    Zero padding of hidden lanes is exact for this ReLU/sigmoid MLP: padded W
    rows/cols and bias lanes are 0, so padded activations are ReLU(0)=0 and
    contribute nothing downstream.
    """
    bf16, f32 = jnp.bfloat16, jnp.float32
    n_code, n_hidden = params["w1"].shape
    Hp = _round_up(n_hidden, 128)   # 128-lane padding only; never pad to 256 "for the MXU"
    w1 = jnp.zeros((n_code, Hp), bf16).at[:, :n_hidden].set(params["w1"].astype(bf16))
    b1 = jnp.zeros((1, Hp), f32).at[:, :n_hidden].set(params["b1"].reshape(1, -1).astype(f32))
    w2 = jnp.zeros((Hp, Hp), bf16).at[:n_hidden, :n_hidden].set(params["w2"].astype(bf16))
    b2 = jnp.zeros((1, Hp), f32).at[:, :n_hidden].set(params["b2"].reshape(1, -1).astype(f32))
    w3 = jnp.zeros((1, Hp), f32).at[:, :n_hidden].set(params["w3"].reshape(1, -1).astype(f32))
    b3 = params["b3"].reshape(1, 1).astype(f32)
    return {"w1": w1, "b1": b1, "w2": w2, "b2": b2, "w3": w3, "b3": b3}


# ---------------------------------------------------------------------------
# Forward
# ---------------------------------------------------------------------------
def _choose_tiling(B, tb_max):
    rows = _round_up(B, 8)
    n_steps = _cdiv(rows, tb_max)
    # v7x has 2 TensorCores: give the "parallel" batch axis >=2 steps when the
    # batch is big enough that splitting beats the extra per-step overhead.
    if n_steps == 1 and rows >= 1024:
        n_steps = 2
    tb = _round_up(_cdiv(B, n_steps), 8)   # even split -> <8 padded rows per step
    return tb, n_steps, n_steps * tb


def _forward(x, p, *, tb_max, lane_dense):
    B, n_code = x.shape
    assert p["w1"].shape[0] == n_code, "params were prepared for a different n_code"
    Hp = p["w1"].shape[1]
    f32 = jnp.float32

    tb, n_steps, Bp = _choose_tiling(B, tb_max)
    if x.dtype != f32:
        x = x.astype(f32)
    if Bp != B:
        x = jnp.pad(x, ((0, Bp - B), (0, 0)))   # bounded batch padding, rows sliced off

    vmem = pltpu.MemorySpace.VMEM
    # Weights are grid-invariant (constant index_map -> stay VMEM-resident).
    # Once Hp is scaled up, single-buffer them and raise the scoped-VMEM limit.
    weight_kw = dict(memory_space=vmem)
    if Hp >= 1024:
        weight_kw["pipeline_mode"] = pl.Buffered(1)

    weight_bytes = ((p["w1"].size + p["w2"].size) * 2
                    + (p["b1"].size + p["b2"].size + p["w3"].size + 1) * 4)
    act_bytes = 2 * tb * n_code * 4 + 2 * tb * Hp * 4 + 2 * tb * 128 * 4
    vmem_limit = None
    if weight_bytes + act_bytes > 24 * 1024 * 1024:
        vmem_limit = min(int(1.5 * (weight_bytes + act_bytes)), 100 * 1024 * 1024)

    in_specs = [
        pl.BlockSpec((tb, n_code), lambda i: (i, 0), memory_space=vmem),  # x tile (f32, unpadded lanes)
        pl.BlockSpec((n_code, Hp), lambda i: (0, 0), **weight_kw),        # W1 (resident)
        pl.BlockSpec((1, Hp), lambda i: (0, 0), **weight_kw),             # b1
        pl.BlockSpec((Hp, Hp), lambda i: (0, 0), **weight_kw),            # W2 (resident)
        pl.BlockSpec((1, Hp), lambda i: (0, 0), **weight_kw),             # b2
        pl.BlockSpec((1, Hp), lambda i: (0, 0), **weight_kw),             # W3 row (f32)
        pl.BlockSpec((1, 1), lambda i: (0, 0), **weight_kw),              # b3
    ]

    flops = 2 * Bp * (n_code * Hp + Hp * Hp + Hp)
    bytes_accessed = Bp * n_code * 4 + weight_bytes + Bp * 4
    cost = pl.CostEstimate(flops=flops, transcendentals=Bp,
                           bytes_accessed=bytes_accessed)
    cparams = pltpu.CompilerParams(dimension_semantics=("parallel",),
                                   vmem_limit_bytes=vmem_limit)

    args = (x, p["w1"], p["b1"], p["w2"], p["b2"], p["w3"], p["b3"])

    if lane_dense:
        out = pl.pallas_call(
            _disc_kernel_lane,
            out_shape=jax.ShapeDtypeStruct((n_steps, 1, tb), f32),
            grid=(n_steps,),
            in_specs=in_specs,
            out_specs=pl.BlockSpec((1, 1, tb), lambda i: (i, 0, 0), memory_space=vmem),
            compiler_params=cparams,
            cost_estimate=cost,
        )(*args)
        return out.reshape(Bp, 1)[:B]

    out = pl.pallas_call(
        _disc_kernel_col,
        out_shape=jax.ShapeDtypeStruct((Bp, 1), f32),
        grid=(n_steps,),
        in_specs=in_specs,
        out_specs=pl.BlockSpec((tb, 1), lambda i: (i, 0), memory_space=vmem),
        compiler_params=cparams,
        cost_estimate=cost,
    )(*args)
    return out[:B]


_LANE_DENSE_OUT = None   # resolved once, on the first forward call


def discriminator_forward(x, prepared_params, *, tb_max=2048):
    """x: (B, n_code) float32 -> (B, 1) float32 probabilities (eval-mode dropout)."""
    global _LANE_DENSE_OUT
    if _LANE_DENSE_OUT is None:
        try:
            out = _forward(x, prepared_params, tb_max=tb_max, lane_dense=True)
            jax.block_until_ready(out)
            _LANE_DENSE_OUT = True
            return out
        except Exception:
            # The installed Mosaic can't lower the small (tb,1)->(1,1,tb) relayout:
            # fall back to the (numerically identical) sublane-major column output.
            _LANE_DENSE_OUT = False
    return _forward(x, prepared_params, tb_max=tb_max, lane_dense=_LANE_DENSE_OUT)


# ---------------------------------------------------------------------------
# Reference + self-test
# ---------------------------------------------------------------------------
def _reference(x, params):
    """Pure-JAX reference mirroring the kernel numerics (bf16 matmuls, f32 accumulate)."""
    bf16, f32 = jnp.bfloat16, jnp.float32
    h1 = jnp.maximum(
        jnp.dot(x.astype(bf16), params["w1"].astype(bf16), preferred_element_type=f32)
        + params["b1"], 0.0)
    h2 = jnp.maximum(
        jnp.dot(h1.astype(bf16), params["w2"].astype(bf16), preferred_element_type=f32)
        + params["b2"], 0.0)
    logits = h2 @ params["w3"].astype(f32) + params["b3"]
    return jax.nn.sigmoid(logits)


if __name__ == "__main__":
    n_code, n_hidden = 32, 64
    key = jax.random.PRNGKey(0)
    kx, kp, kx2, kx3 = jax.random.split(key, 4)
    raw = init_params(kp, n_code, n_hidden)
    prepped = prepare_params(raw)   # one-time weight pad/cast, hoisted out of forward

    def check(B, k):
        x = jax.random.normal(k, (B, n_code), jnp.float32)
        out = jax.block_until_ready(discriminator_forward(x, prepped))
        ref = _reference(x, raw)
        assert out.shape == (B, 1), (out.shape, B)
        assert jnp.allclose(out, ref, atol=1e-4, rtol=1e-4), f"mismatch vs reference (B={B})"

    check(8, kx)       # single small tile
    check(300, kx2)    # non-multiple-of-8 batch: pads to 304 (previously 512), 1 step
    check(1100, kx3)   # large batch: 2 "parallel" grid steps (feeds both v7x TCs)

    print("KERNEL_OK")
</pallas_src>

<mosaic_0001>
module attributes {stable_mosaic.version = 11 : i64} {
  func.func @_disc_kernel_lane(%arg0: i32, %arg1: memref<8x32xf32, #tpu.memory_space<vmem>>, %arg2: memref<32x128xbf16, #tpu.memory_space<vmem>>, %arg3: memref<1x128xf32, #tpu.memory_space<vmem>>, %arg4: memref<128x128xbf16, #tpu.memory_space<vmem>>, %arg5: memref<1x128xf32, #tpu.memory_space<vmem>>, %arg6: memref<1x128xf32, #tpu.memory_space<vmem>>, %arg7: memref<1x1xf32, #tpu.memory_space<vmem>>, %arg8: memref<1x1x8xf32, #tpu.memory_space<vmem>>) attributes {dimension_semantics = [#tpu.dimension_semantics<parallel>], iteration_bounds = array<i64: 1>, scalar_prefetch = 0 : i64, scratch_operands = 0 : i64, tpu.core_type = #tpu.core_type<tc>, window_params = [{transform_indices = @transform_0, window_bounds = array<i64: 8, 32>}, {pipeline_mode = #tpu.pipeline_mode<synchronous>, transform_indices = @transform_1, window_bounds = array<i64: 32, 128>}, {pipeline_mode = #tpu.pipeline_mode<synchronous>, transform_indices = @transform_2, window_bounds = array<i64: 1, 128>}, {pipeline_mode = #tpu.pipeline_mode<synchronous>, transform_indices = @transform_3, window_bounds = array<i64: 128, 128>}, {pipeline_mode = #tpu.pipeline_mode<synchronous>, transform_indices = @transform_4, window_bounds = array<i64: 1, 128>}, {pipeline_mode = #tpu.pipeline_mode<synchronous>, transform_indices = @transform_5, window_bounds = array<i64: 1, 128>}, {pipeline_mode = #tpu.pipeline_mode<synchronous>, transform_indices = @transform_6, window_bounds = array<i64: 1, 1>}, {transform_indices = @transform_7, window_bounds = array<i64: 1, 1, 8>}]} {
    %c0 = arith.constant 0 : index
    %c0_0 = arith.constant 0 : index
    %0 = vector.load %arg1[%c0, %c0_0] : memref<8x32xf32, #tpu.memory_space<vmem>>, vector<8x32xf32>
    %1 = arith.truncf %0 : vector<8x32xf32> to vector<8x32xbf16>
    %c0_1 = arith.constant 0 : index
    %c0_2 = arith.constant 0 : index
    %2 = vector.load %arg2[%c0_1, %c0_2] : memref<32x128xbf16, #tpu.memory_space<vmem>>, vector<32x128xbf16>
    %cst = arith.constant dense<0.000000e+00> : vector<8x128xf32>
    %3 = tpu.matmul %1, %2, %cst {dimension_numbers = #tpu.dot_dimension_numbers<[1], [0], [0], [1], [0, 0, 1, 1], [], []>} : vector<8x32xbf16>, vector<32x128xbf16>, vector<8x128xf32> -> vector<8x128xf32>
    %c0_3 = arith.constant 0 : index
    %c0_4 = arith.constant 0 : index
    %4 = vector.load %arg3[%c0_3, %c0_4] : memref<1x128xf32, #tpu.memory_space<vmem>>, vector<1x128xf32>
    %5 = vector.broadcast %4 : vector<1x128xf32> to vector<8x128xf32>
    %6 = arith.addf %3, %5 : vector<8x128xf32>
    %cst_5 = arith.constant 0.000000e+00 : f32
    %7 = vector.broadcast %cst_5 : f32 to vector<8x128xf32>
    %8 = arith.maximumf %6, %7 : vector<8x128xf32>
    %9 = arith.truncf %8 : vector<8x128xf32> to vector<8x128xbf16>
    %c0_6 = arith.constant 0 : index
    %c0_7 = arith.constant 0 : index
    %10 = vector.load %arg4[%c0_6, %c0_7] : memref<128x128xbf16, #tpu.memory_space<vmem>>, vector<128x128xbf16>
    %cst_8 = arith.constant dense<0.000000e+00> : vector<8x128xf32>
    %11 = tpu.matmul %9, %10, %cst_8 {dimension_numbers = #tpu.dot_dimension_numbers<[1], [0], [0], [1], [0, 0, 1, 1], [], []>} : vector<8x128xbf16>, vector<128x128xbf16>, vector<8x128xf32> -> vector<8x128xf32>
    %c0_9 = arith.constant 0 : index
    %c0_10 = arith.constant 0 : index
    %12 = vector.load %arg5[%c0_9, %c0_10] : memref<1x128xf32, #tpu.memory_space<vmem>>, vector<1x128xf32>
    %13 = vector.broadcast %12 : vector<1x128xf32> to vector<8x128xf32>
    %14 = arith.addf %11, %13 : vector<8x128xf32>
    %cst_11 = arith.constant 0.000000e+00 : f32
    %15 = vector.broadcast %cst_11 : f32 to vector<8x128xf32>
    %16 = arith.maximumf %14, %15 : vector<8x128xf32>
    %c0_12 = arith.constant 0 : index
    %c0_13 = arith.constant 0 : index
    %17 = vector.load %arg6[%c0_12, %c0_13] : memref<1x128xf32, #tpu.memory_space<vmem>>, vector<1x128xf32>
    %18 = vector.broadcast %17 : vector<1x128xf32> to vector<8x128xf32>
    %19 = arith.mulf %16, %18 : vector<8x128xf32>
    %cst_14 = arith.constant dense<0.000000e+00> : vector<8xf32>
    %20 = vector.multi_reduction <add>, %19, %cst_14 [1] : vector<8x128xf32> to vector<8xf32>
    %21 = vector.shape_cast %20 : vector<8xf32> to vector<8x1xf32>
    %c0_15 = arith.constant 0 : index
    %c0_16 = arith.constant 0 : index
    %22 = vector.load %arg7[%c0_15, %c0_16] : memref<1x1xf32, #tpu.memory_space<vmem>>, vector<1x1xf32>
    %23 = vector.broadcast %22 : vector<1x1xf32> to vector<8x1xf32>
    %24 = arith.addf %21, %23 : vector<8x1xf32>
    %25 = arith.negf %24 : vector<8x1xf32>
    %26 = math.exp %25 : vector<8x1xf32>
    %cst_17 = arith.constant 1.000000e+00 : f32
    %27 = vector.broadcast %cst_17 : f32 to vector<8x1xf32>
    %28 = arith.addf %27, %26 : vector<8x1xf32>
    %29 = arith.divf %27, %28 : vector<8x1xf32>
    %30 = vector.shape_cast %29 : vector<8x1xf32> to vector<1x1x8xf32>
    %c0_18 = arith.constant 0 : index
    %c0_19 = arith.constant 0 : index
    %c0_20 = arith.constant 0 : index
    %31 = vector.load %arg8[%c0_18, %c0_19, %c0_20] : memref<1x1x8xf32, #tpu.memory_space<vmem>>, vector<1x1x8xf32>
    tpu.vector_store %arg8[%c0_18, %c0_19, %c0_20], %30 {strides = array<i32>} : memref<1x1x8xf32, #tpu.memory_space<vmem>>, vector<1x1x8xf32>,
    return
  }
  func.func @transform_0(%arg0: i32) -> (i32, i32) {
    %c0_i32 = arith.constant 0 : i32
    %c0_i32_0 = arith.constant 0 : i32
    return %arg0, %c0_i32 : i32, i32
  }
  func.func @transform_1(%arg0: i32) -> (i32, i32) {
    %c0_i32 = arith.constant 0 : i32
    %c0_i32_0 = arith.constant 0 : i32
    %c0_i32_1 = arith.constant 0 : i32
    return %c0_i32, %c0_i32_0 : i32, i32
  }
  func.func @transform_2(%arg0: i32) -> (i32, i32) {
    %c0_i32 = arith.constant 0 : i32
    %c0_i32_0 = arith.constant 0 : i32
    %c0_i32_1 = arith.constant 0 : i32
    return %c0_i32, %c0_i32_0 : i32, i32
  }
  func.func @transform_3(%arg0: i32) -> (i32, i32) {
    %c0_i32 = arith.constant 0 : i32
    %c0_i32_0 = arith.constant 0 : i32
    %c0_i32_1 = arith.constant 0 : i32
    return %c0_i32, %c0_i32_0 : i32, i32
  }
  func.func @transform_4(%arg0: i32) -> (i32, i32) {
    %c0_i32 = arith.constant 0 : i32
    %c0_i32_0 = arith.constant 0 : i32
    %c0_i32_1 = arith.constant 0 : i32
    return %c0_i32, %c0_i32_0 : i32, i32
  }
  func.func @transform_5(%arg0: i32) -> (i32, i32) {
    %c0_i32 = arith.constant 0 : i32
    %c0_i32_0 = arith.constant 0 : i32
    %c0_i32_1 = arith.constant 0 : i32
    return %c0_i32, %c0_i32_0 : i32, i32
  }
  func.func @transform_6(%arg0: i32) -> (i32, i32) {
    %c0_i32 = arith.constant 0 : i32
    %c0_i32_0 = arith.constant 0 : i32
    %c0_i32_1 = arith.constant 0 : i32
    return %c0_i32, %c0_i32_0 : i32, i32
  }
  func.func @transform_7(%arg0: i32) -> (i32, i32, i32) {
    %c0_i32 = arith.constant 0 : i32
    %c0_i32_0 = arith.constant 0 : i32
    %c0_i32_1 = arith.constant 0 : i32
    return %arg0, %c0_i32, %c0_i32_0 : i32, i32, i32
  }
}

module attributes {stable_mosaic.version = 11 : i64} {
  func.func @_disc_kernel_col(%arg0: i32, %arg1: memref<8x32xf32, #tpu.memory_space<vmem>>, %arg2: memref<32x128xbf16, #tpu.memory_space<vmem>>, %arg3: memref<1x128xf32, #tpu.memory_space<vmem>>, %arg4: memref<128x128xbf16, #tpu.memory_space<vmem>>, %arg5: memref<1x128xf32, #tpu.memory_space<vmem>>, %arg6: memref<1x128xf32, #tpu.memory_space<vmem>>, %arg7: memref<1x1xf32, #tpu.memory_space<vmem>>, %arg8: memref<8x1xf32, #tpu.memory_space<vmem>>) attributes {dimension_semantics = [#tpu.dimension_semantics<parallel>], iteration_bounds = array<i64: 1>, scalar_prefetch = 0 : i64, scratch_operands = 0 : i64, tpu.core_type = #tpu.core_type<tc>, window_params = [{transform_indices = @transform_0, window_bounds = array<i64: 8, 32>}, {pipeline_mode = #tpu.pipeline_mode<synchronous>, transform_indices = @transform_1, window_bounds = array<i64: 32, 128>}, {pipeline_mode = #tpu.pipeline_mode<synchronous>, transform_indices = @transform_2, window_bounds = array<i64: 1, 128>}, {pipeline_mode = #tpu.pipeline_mode<synchronous>, transform_indices = @transform_3, window_bounds = array<i64: 128, 128>}, {pipeline_mode = #tpu.pipeline_mode<synchronous>, transform_indices = @transform_4, window_bounds = array<i64: 1, 128>}, {pipeline_mode = #tpu.pipeline_mode<synchronous>, transform_indices = @transform_5, window_bounds = array<i64: 1, 128>}, {pipeline_mode = #tpu.pipeline_mode<synchronous>, transform_indices = @transform_6, window_bounds = array<i64: 1, 1>}, {transform_indices = @transform_7, window_bounds = array<i64: 8, 1>}]} {
    %c0 = arith.constant 0 : index
    %c0_0 = arith.constant 0 : index
    %0 = vector.load %arg1[%c0, %c0_0] : memref<8x32xf32, #tpu.memory_space<vmem>>, vector<8x32xf32>
    %1 = arith.truncf %0 : vector<8x32xf32> to vector<8x32xbf16>
    %c0_1 = arith.constant 0 : index
    %c0_2 = arith.constant 0 : index
    %2 = vector.load %arg2[%c0_1, %c0_2] : memref<32x128xbf16, #tpu.memory_space<vmem>>, vector<32x128xbf16>
    %cst = arith.constant dense<0.000000e+00> : vector<8x128xf32>
    %3 = tpu.matmul %1, %2, %cst {dimension_numbers = #tpu.dot_dimension_numbers<[1], [0], [0], [1], [0, 0, 1, 1], [], []>} : vector<8x32xbf16>, vector<32x128xbf16>, vector<8x128xf32> -> vector<8x128xf32>
    %c0_3 = arith.constant 0 : index
    %c0_4 = arith.constant 0 : index
    %4 = vector.load %arg3[%c0_3, %c0_4] : memref<1x128xf32, #tpu.memory_space<vmem>>, vector<1x128xf32>
    %5 = vector.broadcast %4 : vector<1x128xf32> to vector<8x128xf32>
    %6 = arith.addf %3, %5 : vector<8x128xf32>
    %cst_5 = arith.constant 0.000000e+00 : f32
    %7 = vector.broadcast %cst_5 : f32 to vector<8x128xf32>
    %8 = arith.maximumf %6, %7 : vector<8x128xf32>
    %9 = arith.truncf %8 : vector<8x128xf32> to vector<8x128xbf16>
    %c0_6 = arith.constant 0 : index
    %c0_7 = arith.constant 0 : index
    %10 = vector.load %arg4[%c0_6, %c0_7] : memref<128x128xbf16, #tpu.memory_space<vmem>>, vector<128x128xbf16>
    %cst_8 = arith.constant dense<0.000000e+00> : vector<8x128xf32>
    %11 = tpu.matmul %9, %10, %cst_8 {dimension_numbers = #tpu.dot_dimension_numbers<[1], [0], [0], [1], [0, 0, 1, 1], [], []>} : vector<8x128xbf16>, vector<128x128xbf16>, vector<8x128xf32> -> vector<8x128xf32>
    %c0_9 = arith.constant 0 : index
    %c0_10 = arith.constant 0 : index
    %12 = vector.load %arg5[%c0_9, %c0_10] : memref<1x128xf32, #tpu.memory_space<vmem>>, vector<1x128xf32>
    %13 = vector.broadcast %12 : vector<1x128xf32> to vector<8x128xf32>
    %14 = arith.addf %11, %13 : vector<8x128xf32>
    %cst_11 = arith.constant 0.000000e+00 : f32
    %15 = vector.broadcast %cst_11 : f32 to vector<8x128xf32>
    %16 = arith.maximumf %14, %15 : vector<8x128xf32>
    %c0_12 = arith.constant 0 : index
    %c0_13 = arith.constant 0 : index
    %17 = vector.load %arg6[%c0_12, %c0_13] : memref<1x128xf32, #tpu.memory_space<vmem>>, vector<1x128xf32>
    %18 = vector.broadcast %17 : vector<1x128xf32> to vector<8x128xf32>
    %19 = arith.mulf %16, %18 : vector<8x128xf32>
    %cst_14 = arith.constant dense<0.000000e+00> : vector<8xf32>
    %20 = vector.multi_reduction <add>, %19, %cst_14 [1] : vector<8x128xf32> to vector<8xf32>
    %21 = vector.shape_cast %20 : vector<8xf32> to vector<8x1xf32>
    %c0_15 = arith.constant 0 : index
    %c0_16 = arith.constant 0 : index
    %22 = vector.load %arg7[%c0_15, %c0_16] : memref<1x1xf32, #tpu.memory_space<vmem>>, vector<1x1xf32>
    %23 = vector.broadcast %22 : vector<1x1xf32> to vector<8x1xf32>
    %24 = arith.addf %21, %23 : vector<8x1xf32>
    %25 = arith.negf %24 : vector<8x1xf32>
    %26 = math.exp %25 : vector<8x1xf32>
    %cst_17 = arith.constant 1.000000e+00 : f32
    %27 = vector.broadcast %cst_17 : f32 to vector<8x1xf32>
    %28 = arith.addf %27, %26 : vector<8x1xf32>
    %29 = arith.divf %27, %28 : vector<8x1xf32>
    %c0_18 = arith.constant 0 : index
    %c0_19 = arith.constant 0 : index
    %30 = vector.load %arg8[%c0_18, %c0_19] : memref<8x1xf32, #tpu.memory_space<vmem>>, vector<8x1xf32>
    tpu.vector_store %arg8[%c0_18, %c0_19], %29 {strides = array<i32>} : memref<8x1xf32, #tpu.memory_space<vmem>>, vector<8x1xf32>,
    return
  }
  func.func @transform_0(%arg0: i32) -> (i32, i32) {
    %c0_i32 = arith.constant 0 : i32
    %c0_i32_0 = arith.constant 0 : i32
    return %arg0, %c0_i32 : i32, i32
  }
  func.func @transform_1(%arg0: i32) -> (i32, i32) {
    %c0_i32 = arith.constant 0 : i32
    %c0_i32_0 = arith.constant 0 : i32
    %c0_i32_1 = arith.constant 0 : i32
    return %c0_i32, %c0_i32_0 : i32, i32
  }
  func.func @transform_2(%arg0: i32) -> (i32, i32) {
    %c0_i32 = arith.constant 0 : i32
    %c0_i32_0 = arith.constant 0 : i32
    %c0_i32_1 = arith.constant 0 : i32
    return %c0_i32, %c0_i32_0 : i32, i32
  }
  func.func @transform_3(%arg0: i32) -> (i32, i32) {
    %c0_i32 = arith.constant 0 : i32
    %c0_i32_0 = arith.constant 0 : i32
    %c0_i32_1 = arith.constant 0 : i32
    return %c0_i32, %c0_i32_0 : i32, i32
  }
  func.func @transform_4(%arg0: i32) -> (i32, i32) {
    %c0_i32 = arith.constant 0 : i32
    %c0_i32_0 = arith.constant 0 : i32
    %c0_i32_1 = arith.constant 0 : i32
    return %c0_i32, %c0_i32_0 : i32, i32
  }
  func.func @transform_5(%arg0: i32) -> (i32, i32) {
    %c0_i32 = arith.constant 0 : i32
    %c0_i32_0 = arith.constant 0 : i32
    %c0_i32_1 = arith.constant 0 : i32
    return %c0_i32, %c0_i32_0 : i32, i32
  }
  func.func @transform_6(%arg0: i32) -> (i32, i32) {
    %c0_i32 = arith.constant 0 : i32
    %c0_i32_0 = arith.constant 0 : i32
    %c0_i32_1 = arith.constant 0 : i32
    return %c0_i32, %c0_i32_0 : i32, i32
  }
  func.func @transform_7(%arg0: i32) -> (i32, i32) {
    %c0_i32 = arith.constant 0 : i32
    %c0_i32_0 = arith.constant 0 : i32
    return %arg0, %c0_i32 : i32, i32
  }
}

</mosaic_0001>

<llo_original>
// kernel: tpu_custom_call.1
$region0: #{tpu_custom_call.1}
  #allocation0 [shape = 'u32[]', space=smem, size = 0x4, offset = 0x4, fixed_abs, tag = 'smem constant byte address 0x4 - core index']
  #allocation1 [shape = 'u32[144,128]{1,0:T(1,128)}', space=vmem, size = 0x12000, scoped, tag = 'internal scratch']
  #allocation2 [shape = 'f32[1,1]{1,0:T(1,128)S(1)}', space=vmem, size = 0x200, scoped, tag = 'scoped memory for tpu_custom_call.1']
  %s0 = inlined_call_operand.hbm [shape: f32[8,32], index: 0, kind: input, shape index: {}]
  %s1 = inlined_call_operand.hbm [shape: bf16[32,128], index: 1, kind: input, shape index: {}]
  %s2 = inlined_call_operand.vmem [shape: f32[1,128], index: 2, kind: input, shape index: {}]
  %s3 = inlined_call_operand.hbm [shape: bf16[128,128], index: 3, kind: input, shape index: {}]
  %s4 = inlined_call_operand.vmem [shape: f32[1,128], index: 4, kind: input, shape index: {}]
  %s5 = inlined_call_operand.vmem [shape: f32[1,128], index: 5, kind: input, shape index: {}]
  %s6 = inlined_call_operand.<no memory space> [shape: f32[1,1], index: 6, kind: input, shape index: {}]
  %s7 = inlined_call_operand.hbm [shape: f32[1,1,8], index: 7, kind: output, shape index: {}]
  %s8 = sld [smem:[#allocation0]]
  $region50: #{tpu_custom_call.1} parent=0
    _
  %s10 = ssub.s32 1, %s8
  %s11 = scalar_select 0, %s10, %s8
  %v12 = vstv %s6
  %13 = vst [vmem:[#allocation2] sm:$0x1] %v12
  $region1: #{tpu_custom_call.1} parent=0
    #allocation3 [shape = 'u8[4096]{0}', space=vmem, size = 0x1000, scoped, tag = 'input window, operand 0, single buffered']
    #allocation4 [shape = 's32[1]{0}', space=sflag, size = 0x4, scoped, tag = 'scoped memory for tpu_custom_call.1']
    #allocation5 [shape = 's32[1]{0}', space=sflag, size = 0x4, scoped, tag = 'scoped memory for tpu_custom_call.1']
    #allocation6 [shape = 'u8[8192]{0}', space=vmem, size = 0x2000, scoped, tag = 'input window, operand 1, single buffered']
    #allocation7 [shape = 's32[1]{0}', space=sflag, size = 0x4, scoped, tag = 'scoped memory for tpu_custom_call.1']
    #allocation8 [shape = 'u8[32768]{0}', space=vmem, size = 0x8000, scoped, tag = 'input window, operand 3, single buffered']
    #allocation9 [shape = 'u8[512]{0}', space=vmem, size = 0x400, scoped, tag = 'output window, operand 0, single buffered']
    %14 = vsyncpa [#allocation4], 0
    %15 = vsyncpa [#allocation7], 0
    %16 = vsyncpa [#allocation5], 0
    // Predicated region
    $region2: #{tpu_custom_call.1} parent=1 // pred_check
      _
    $region3: #{tpu_custom_call.1} parent=1 // pred_check_branch
      %18 = sbr.rel (0) target = $region5
    $region4: #{tpu_custom_call.1} parent=1 // pred_region
      %s20 = ssub.s32 128, 128
      %21 = vsyncadd [#allocation4], %s20
      %s23 = sshll.u32 [#allocation3], 4
      %s24 = int_to_ptr.vmem [resolvable:$true] %s23
      %26 = dma.hbm_to_vmem [thread:$0]  %s0, 128, %s24, [#allocation4]
    $region5: #{tpu_custom_call.1} parent=1 // pred_fallthru
      _
    // Predicated region
    $region6: #{tpu_custom_call.1} parent=1 // pred_check
      _
    $region7: #{tpu_custom_call.1} parent=1 // pred_check_branch
      %28 = sbr.rel (0) target = $region9
    $region8: #{tpu_custom_call.1} parent=1 // pred_region
      %s30 = ssub.s32 256, 256
      %31 = vsyncadd [#allocation7], %s30
      %s32 = sshll.u32 [#allocation6], 4
      %s33 = int_to_ptr.vmem [resolvable:$true] %s32
      %38 = dma.hbm_to_vmem [thread:$0]  %s1, 256, %s33, [#allocation7], 64, 64, 4
    $region9: #{tpu_custom_call.1} parent=1 // pred_fallthru
      _
    // Predicated region
    $region10: #{tpu_custom_call.1} parent=1 // pred_check
      _
    $region11: #{tpu_custom_call.1} parent=1 // pred_check_branch
      %40 = sbr.rel (0) target = $region13
    $region12: #{tpu_custom_call.1} parent=1 // pred_region
      _
    $region13: #{tpu_custom_call.1} parent=1 // pred_fallthru
      _
    // Predicated region
    $region14: #{tpu_custom_call.1} parent=1 // pred_check
      _
    $region15: #{tpu_custom_call.1} parent=1 // pred_check_branch
      %42 = sbr.rel (0) target = $region17
    $region16: #{tpu_custom_call.1} parent=1 // pred_region
      %s44 = ssub.s32 1024, 1024
      %45 = vsyncadd [#allocation7], %s44
      %s46 = sshll.u32 [#allocation8], 4
      %s47 = int_to_ptr.vmem [resolvable:$true] %s46
      %52 = dma.hbm_to_vmem [thread:$0]  %s3, 1024, %s47, [#allocation7], 64, 64, 4
    $region17: #{tpu_custom_call.1} parent=1 // pred_fallthru
      _
    // Predicated region
    $region18: #{tpu_custom_call.1} parent=1 // pred_check
      _
    $region19: #{tpu_custom_call.1} parent=1 // pred_check_branch
      %54 = sbr.rel (0) target = $region21
    $region20: #{tpu_custom_call.1} parent=1 // pred_region
      _
    $region21: #{tpu_custom_call.1} parent=1 // pred_fallthru
      _
    // Predicated region
    $region22: #{tpu_custom_call.1} parent=1 // pred_check
      _
    $region23: #{tpu_custom_call.1} parent=1 // pred_check_branch
      %56 = sbr.rel (0) target = $region25
    $region24: #{tpu_custom_call.1} parent=1 // pred_region
      _
    $region25: #{tpu_custom_call.1} parent=1 // pred_fallthru
      _
    // Predicated region
    $region26: #{tpu_custom_call.1} parent=1 // pred_check
      _
    $region27: #{tpu_custom_call.1} parent=1 // pred_check_branch
      %58 = sbr.rel (0) target = $region29
    $region28: #{tpu_custom_call.1} parent=1 // pred_region
      _
    $region29: #{tpu_custom_call.1} parent=1 // pred_fallthru
      _
    // Predicated region
    $region30: #{tpu_custom_call.1} parent=1 // pred_check
      _
    $region31: #{tpu_custom_call.1} parent=1 // pred_check_branch
      %60 = sbr.rel (0) target = $region33
    $region32: #{tpu_custom_call.1} parent=1 // pred_region
      %61 = dma.done [#allocation4], 128
    $region33: #{tpu_custom_call.1} parent=1 // pred_fallthru
      _
    // Predicated region
    $region34: #{tpu_custom_call.1} parent=1 // pred_check
      _
    $region35: #{tpu_custom_call.1} parent=1 // pred_check_branch
      %63 = sbr.rel (0) target = $region37
    $region36: #{tpu_custom_call.1} parent=1 // pred_region
      %64 = dma.done [#allocation7], 256
    $region37: #{tpu_custom_call.1} parent=1 // pred_fallthru
      _
    // Predicated region
    $region38: #{tpu_custom_call.1} parent=1 // pred_check
      _
    $region39: #{tpu_custom_call.1} parent=1 // pred_check_branch
      %66 = sbr.rel (0) target = $region41
    $region40: #{tpu_custom_call.1} parent=1 // pred_region
      %67 = dma.done [#allocation7], 1024
    $region41: #{tpu_custom_call.1} parent=1 // pred_fallthru
      _
    %v69 = vld [vmem:[#allocation3] sm:$0xff]
    %v70 = vpack.c.bf16 %v69, %v69
    %v71 = vld [vmem:[#allocation6] sm:$0xf]
    %v72 = vld [vmem:[#allocation6 + $0x4] sm:$0xf]
    %v73 = vld [vmem:[#allocation6 + $0x8] sm:$0xf]
    %v74 = vld [vmem:[#allocation6 + $0xc] sm:$0xf]
    %v75 = vld [vmem:[%s2] sm:$0x1]
    %v77 = vlaneseq
    %v78 = vshrl.u32 %v77, 7
    %v79 = vsub.s32 0, %v78
    %v80 = vrot.slane %v75, %v79
    %v86 = vunpack.c.l.b16 %v71
    %v87 = vunpack.c.l.b16 %v72
    %v88 = vunpack.c.l.b16 %v73
    %v89 = vunpack.c.l.b16 %v74
    %v90 = vpack.c.b16 %v87, %v86
    %v91 = vpack.c.b16 %v89, %v88
    %vm94 = vcmask 261120
    %v96 = vsel %vm94, %v70, 0
    %98 = vmatprep.subr.bf16.mxu0 0
    %99 = vmatpush1.bf16.msra.mxu0 %v90
    %100 = vmatprep.subr.bf16.mxu0 0
    %101 = vmatpush1.bf16.msra.mxu0 %v91
    %102 = vmatprep.subr.bf16.mxu0 0
    %103 = vmatpush1.bf16.msra.mxu0 0
    %104 = vmatprep.subr.bf16.mxu0 0
    %105 = vmatpush1.bf16.msra.mxu0 0
    %106 = vmatprep.subr.bf16.mxu0 0
    %107 = vmatpush1.bf16.msra.mxu0 0
    %108 = vmatprep.subr.bf16.mxu0 0
    %109 = vmatpush1.bf16.msra.mxu0 0
    %110 = vmatprep.subr.bf16.mxu0 0
    %111 = vmatpush1.bf16.msra.mxu0 0
    %112 = vmatprep.subr.bf16.mxu0 0
    %113 = vmatpush1.bf16.msra.mxu0 0
    %114 = vmatprep.subr.bf16.mxu0 0
    %115 = vmatpush1.bf16.msra.mxu0 0
    %116 = vmatprep.subr.bf16.mxu0 0
    %117 = vmatpush1.bf16.msra.mxu0 0
    %118 = vmatprep.subr.bf16.mxu0 0
    %119 = vmatpush1.bf16.msra.mxu0 0
    %120 = vmatprep.subr.bf16.mxu0 0
    %121 = vmatpush1.bf16.msra.mxu0 0
    %122 = vmatprep.subr.bf16.mxu0 0
    %123 = vmatpush1.bf16.msra.mxu0 0
    %124 = vmatprep.subr.bf16.mxu0 0
    %125 = vmatpush1.bf16.msra.mxu0 0
    %126 = vmatprep.subr.bf16.mxu0 0
    %127 = vmatpush1.bf16.msra.mxu0 0
    %128 = vmatprep.subr.bf16.mxu0 0
    %129 = vmatpush1.bf16.msra.mxu0 0
    %130 = vmatprep.mubr.bf16.mxu0 0
    %131 = vmatmul.mubr.bf16.gmra.mrb[0].mxu0 %v96
    %v132 = vpop.f32.mrb[0].mxu0
    %v133 = vadd.f32 %v80, %v132
    %v134 = vpop.f32.mrb[0].mxu0
    %v135 = vpop.f32.mrb[0].mxu0
    %v136 = vpop.f32.mrb[0].mxu0
    %137 = vdwg.mxu0
    %v138 = vmax.f32 %v133, 0.0
    %v139 = vpack.c.bf16 %v138, %v138
    %v140 = vld [vmem:[#allocation8] sm:$0xf]
    %v141 = vld [vmem:[#allocation8 + $0x4] sm:$0xf]
    %v142 = vld [vmem:[#allocation8 + $0x8] sm:$0xf]
    %v143 = vld [vmem:[#allocation8 + $0xc] sm:$0xf]
    %v144 = vld [vmem:[#allocation8 + $0x10] sm:$0xf]
    %v145 = vld [vmem:[#allocation8 + $0x14] sm:$0xf]
    %v146 = vld [vmem:[#allocation8 + $0x18] sm:$0xf]
    %v147 = vld [vmem:[#allocation8 + $0x1c] sm:$0xf]
    %v148 = vld [vmem:[#allocation8 + $0x20] sm:$0xf]
    %v149 = vld [vmem:[#allocation8 + $0x24] sm:$0xf]
    %v150 = vld [vmem:[#allocation8 + $0x28] sm:$0xf]
    %v151 = vld [vmem:[#allocation8 + $0x2c] sm:$0xf]
    %v152 = vld [vmem:[#allocation8 + $0x30] sm:$0xf]
    %v153 = vld [vmem:[#allocation8 + $0x34] sm:$0xf]
    %v154 = vld [vmem:[#allocation8 + $0x38] sm:$0xf]
    %v155 = vld [vmem:[#allocation8 + $0x3c] sm:$0xf]
    %v156 = vld [vmem:[%s4] sm:$0x1]
    %v158 = vlaneseq
    %v159 = vshrl.u32 %v158, 7
    %v160 = vsub.s32 0, %v159
    %v161 = vrot.slane %v156, %v160
    %v179 = vunpack.c.l.b16 %v140
    %v180 = vunpack.c.l.b16 %v141
    %v181 = vunpack.c.l.b16 %v142
    %v182 = vunpack.c.l.b16 %v143
    %v183 = vunpack.c.l.b16 %v144
    %v184 = vunpack.c.l.b16 %v145
    %v185 = vunpack.c.l.b16 %v146
    %v186 = vunpack.c.l.b16 %v147
    %v187 = vunpack.c.l.b16 %v148
    %v188 = vunpack.c.l.b16 %v149
    %v189 = vunpack.c.l.b16 %v150
    %v190 = vunpack.c.l.b16 %v151
    %v191 = vunpack.c.l.b16 %v152
    %v192 = vunpack.c.l.b16 %v153
    %v193 = vunpack.c.l.b16 %v154
    %v194 = vunpack.c.l.b16 %v155
    %v195 = vpack.c.b16 %v180, %v179
    %v196 = vpack.c.b16 %v182, %v181
    %v197 = vpack.c.b16 %v184, %v183
    %v198 = vpack.c.b16 %v186, %v185
    %v199 = vpack.c.b16 %v188, %v187
    %v200 = vpack.c.b16 %v190, %v189
    %v201 = vpack.c.b16 %v192, %v191
    %v202 = vpack.c.b16 %v194, %v193
    %211 = vmatprep.subr.bf16.mxu0 0
    %212 = vmatpush1.bf16.msra.mxu0 %v195
    %213 = vmatprep.subr.bf16.mxu0 0
    %214 = vmatpush1.bf16.msra.mxu0 %v196
    %215 = vmatprep.subr.bf16.mxu0 0
    %216 = vmatpush1.bf16.msra.mxu0 %v197
    %217 = vmatprep.subr.bf16.mxu0 0
    %218 = vmatpush1.bf16.msra.mxu0 %v198
    %219 = vmatprep.subr.bf16.mxu0 0
    %220 = vmatpush1.bf16.msra.mxu0 %v199
    %221 = vmatprep.subr.bf16.mxu0 0
    %222 = vmatpush1.bf16.msra.mxu0 %v200
    %223 = vmatprep.subr.bf16.mxu0 0
    %224 = vmatpush1.bf16.msra.mxu0 %v201
    %225 = vmatprep.subr.bf16.mxu0 0
    %226 = vmatpush1.bf16.msra.mxu0 %v202
    %227 = vmatprep.subr.bf16.mxu0 0
    %228 = vmatpush1.bf16.msra.mxu0 0
    %229 = vmatprep.subr.bf16.mxu0 0
    %230 = vmatpush1.bf16.msra.mxu0 0
    %231 = vmatprep.subr.bf16.mxu0 0
    %232 = vmatpush1.bf16.msra.mxu0 0
    %233 = vmatprep.subr.bf16.mxu0 0
    %234 = vmatpush1.bf16.msra.mxu0 0
    %235 = vmatprep.subr.bf16.mxu0 0
    %236 = vmatpush1.bf16.msra.mxu0 0
    %237 = vmatprep.subr.bf16.mxu0 0
    %238 = vmatpush1.bf16.msra.mxu0 0
    %239 = vmatprep.subr.bf16.mxu0 0
    %240 = vmatpush1.bf16.msra.mxu0 0
    %241 = vmatprep.subr.bf16.mxu0 0
    %242 = vmatpush1.bf16.msra.mxu0 0
    %243 = vmatprep.mubr.bf16.mxu0 0
    %244 = vmatmul.mubr.bf16.gmra.mrb[0].mxu0 %v139
    %v245 = vpop.f32.mrb[0].mxu0
    %v246 = vadd.f32 %v161, %v245
    %v247 = vpop.f32.mrb[0].mxu0
    %v248 = vpop.f32.mrb[0].mxu0
    %v249 = vpop.f32.mrb[0].mxu0
    %250 = vdwg.mxu0
    %v251 = vmax.f32 %v246, 0.0
    %v252 = vld [vmem:[%s5] sm:$0x1]
    %v254 = vlaneseq
    %v255 = vshrl.u32 %v254, 7
    %v256 = vsub.s32 0, %v255
    %v257 = vrot.slane %v252, %v256
    %v259 = vmul.f32 %v251, %v257
    %260 = vadd.xlane.f32.xlu0 %v259
    %v261 = vpop.xlane.xlu0 %260
    %v262 = vld [vmem:[#allocation2] sm:$0x1]
    %v264 = vlaneseq
    %v265 = vshrl.u32 %v264, 7
    %v266 = vsub.s32 0, %v265
    %v267 = vrot.slane %v262, %v266
    %v269 = vadd.f32 %v261, %v267
    %v270 = vxor.u32 %v269, 2147483648
    %v271 = vmul.f32 %v270, 1.442695
    %v272 = vpow.pop %v271
    %v273 = vadd.f32 %v272, 1.0
    %v274 = vrcp.pop %v273
    %v275 = vmul.f32 1.0, %v274
    %277 = vset.pattern.permute.xlu0 0
    %278 = vperm.xlu0 %277, %v275
    %v279 = vpop.permute.xlu0 %278
    %v280 = vlaneseq
    %v281 = vand.u32 %v280, 127
    %v282 = vlaneseq
    %v283 = vshrl.u32 %v282, 7
    %v284 = vsub.s32 %v281, %v283
    %v285 = vrot.slane %v279, %v284
    %vm287 = vcmask 57344
    %288 = vst.msk [vmem:[#allocation9] sm:$0x1] %vm287, %v285
    // Predicated region
    $region42: #{tpu_custom_call.1} parent=1 // pred_check
      _
    $region43: #{tpu_custom_call.1} parent=1 // pred_check_branch
      %290 = sbr.rel (0) target = $region45
    $region44: #{tpu_custom_call.1} parent=1 // pred_region
      %s292 = ssub.s32 16, 16
      %293 = vsyncadd [#allocation5], %s292
      %s295 = sshll.u32 [#allocation9], 4
      %s296 = int_to_ptr.vmem [resolvable:$true] %s295
      %298 = dma.vmem_to_hbm [thread:$0]  %s296, 16, %s7, [#allocation5]
    $region45: #{tpu_custom_call.1} parent=1 // pred_fallthru
      _
    // Predicated region
    $region46: #{tpu_custom_call.1} parent=1 // pred_check
      _
    $region47: #{tpu_custom_call.1} parent=1 // pred_check_branch
      %300 = sbr.rel (0) target = $region49
    $region48: #{tpu_custom_call.1} parent=1 // pred_region
      %301 = dma.done [#allocation5], 16
    $region49: #{tpu_custom_call.1} parent=1 // pred_fallthru
      _
    %302 = vsyncpa [#allocation4], 1
    %303 = vsyncpa [#allocation7], 1
    %304 = vsyncpa [#allocation5], 1

// kernel: tpu_custom_call.1
$region0: #{tpu_custom_call.1}
  #allocation0 [shape = 'u32[]', space=smem, size = 0x4, offset = 0x4, fixed_abs, tag = 'smem constant byte address 0x4 - core index']
  #allocation1 [shape = 'u32[144,128]{1,0:T(1,128)}', space=vmem, size = 0x12000, scoped, tag = 'internal scratch']
  #allocation2 [shape = 'f32[1,1]{1,0:T(1,128)S(1)}', space=vmem, size = 0x200, scoped, tag = 'scoped memory for tpu_custom_call.1']
  %s0 = inlined_call_operand.hbm [shape: f32[8,32], index: 0, kind: input, shape index: {}]
  %s1 = inlined_call_operand.hbm [shape: bf16[32,128], index: 1, kind: input, shape index: {}]
  %s2 = inlined_call_operand.vmem [shape: f32[1,128], index: 2, kind: input, shape index: {}]
  %s3 = inlined_call_operand.hbm [shape: bf16[128,128], index: 3, kind: input, shape index: {}]
  %s4 = inlined_call_operand.vmem [shape: f32[1,128], index: 4, kind: input, shape index: {}]
  %s5 = inlined_call_operand.vmem [shape: f32[1,128], index: 5, kind: input, shape index: {}]
  %s6 = inlined_call_operand.<no memory space> [shape: f32[1,1], index: 6, kind: input, shape index: {}]
  %s7 = inlined_call_operand.vmem [shape: f32[8,1], index: 7, kind: output, shape index: {}]
  %s8 = sld [smem:[#allocation0]]
  $region50: #{tpu_custom_call.1} parent=0
    _
  %s10 = ssub.s32 1, %s8
  %s11 = scalar_select 0, %s10, %s8
  %v12 = vstv %s6
  %13 = vst [vmem:[#allocation2] sm:$0x1] %v12
  $region1: #{tpu_custom_call.1} parent=0
    #allocation3 [shape = 'u8[4096]{0}', space=vmem, size = 0x1000, scoped, tag = 'input window, operand 0, single buffered']
    #allocation4 [shape = 's32[1]{0}', space=sflag, size = 0x4, scoped, tag = 'scoped memory for tpu_custom_call.1']
    #allocation5 [shape = 'u8[8192]{0}', space=vmem, size = 0x2000, scoped, tag = 'input window, operand 1, single buffered']
    #allocation6 [shape = 's32[1]{0}', space=sflag, size = 0x4, scoped, tag = 'scoped memory for tpu_custom_call.1']
    #allocation7 [shape = 'u8[32768]{0}', space=vmem, size = 0x8000, scoped, tag = 'input window, operand 3, single buffered']
    %14 = vsyncpa [#allocation4], 0
    %15 = vsyncpa [#allocation6], 0
    // Predicated region
    $region2: #{tpu_custom_call.1} parent=1 // pred_check
      _
    $region3: #{tpu_custom_call.1} parent=1 // pred_check_branch
      %17 = sbr.rel (0) target = $region5
    $region4: #{tpu_custom_call.1} parent=1 // pred_region
      %s19 = ssub.s32 128, 128
      %20 = vsyncadd [#allocation4], %s19
      %s22 = sshll.u32 [#allocation3], 4
      %s23 = int_to_ptr.vmem [resolvable:$true] %s22
      %25 = dma.hbm_to_vmem [thread:$0]  %s0, 128, %s23, [#allocation4]
    $region5: #{tpu_custom_call.1} parent=1 // pred_fallthru
      _
    // Predicated region
    $region6: #{tpu_custom_call.1} parent=1 // pred_check
      _
    $region7: #{tpu_custom_call.1} parent=1 // pred_check_branch
      %27 = sbr.rel (0) target = $region9
    $region8: #{tpu_custom_call.1} parent=1 // pred_region
      %s29 = ssub.s32 256, 256
      %30 = vsyncadd [#allocation6], %s29
      %s31 = sshll.u32 [#allocation5], 4
      %s32 = int_to_ptr.vmem [resolvable:$true] %s31
      %37 = dma.hbm_to_vmem [thread:$0]  %s1, 256, %s32, [#allocation6], 64, 64, 4
    $region9: #{tpu_custom_call.1} parent=1 // pred_fallthru
      _
    // Predicated region
    $region10: #{tpu_custom_call.1} parent=1 // pred_check
      _
    $region11: #{tpu_custom_call.1} parent=1 // pred_check_branch
      %39 = sbr.rel (0) target = $region13
    $region12: #{tpu_custom_call.1} parent=1 // pred_region
      _
    $region13: #{tpu_custom_call.1} parent=1 // pred_fallthru
      _
    // Predicated region
    $region14: #{tpu_custom_call.1} parent=1 // pred_check
      _
    $region15: #{tpu_custom_call.1} parent=1 // pred_check_branch
      %41 = sbr.rel (0) target = $region17
    $region16: #{tpu_custom_call.1} parent=1 // pred_region
      %s43 = ssub.s32 1024, 1024
      %44 = vsyncadd [#allocation6], %s43
      %s45 = sshll.u32 [#allocation7], 4
      %s46 = int_to_ptr.vmem [resolvable:$true] %s45
      %51 = dma.hbm_to_vmem [thread:$0]  %s3, 1024, %s46, [#allocation6], 64, 64, 4
    $region17: #{tpu_custom_call.1} parent=1 // pred_fallthru
      _
    // Predicated region
    $region18: #{tpu_custom_call.1} parent=1 // pred_check
      _
    $region19: #{tpu_custom_call.1} parent=1 // pred_check_branch
      %53 = sbr.rel (0) target = $region21
    $region20: #{tpu_custom_call.1} parent=1 // pred_region
      _
    $region21: #{tpu_custom_call.1} parent=1 // pred_fallthru
      _
    // Predicated region
    $region22: #{tpu_custom_call.1} parent=1 // pred_check
      _
    $region23: #{tpu_custom_call.1} parent=1 // pred_check_branch
      %55 = sbr.rel (0) target = $region25
    $region24: #{tpu_custom_call.1} parent=1 // pred_region
      _
    $region25: #{tpu_custom_call.1} parent=1 // pred_fallthru
      _
    // Predicated region
    $region26: #{tpu_custom_call.1} parent=1 // pred_check
      _
    $region27: #{tpu_custom_call.1} parent=1 // pred_check_branch
      %57 = sbr.rel (0) target = $region29
    $region28: #{tpu_custom_call.1} parent=1 // pred_region
      _
    $region29: #{tpu_custom_call.1} parent=1 // pred_fallthru
      _
    // Predicated region
    $region30: #{tpu_custom_call.1} parent=1 // pred_check
      _
    $region31: #{tpu_custom_call.1} parent=1 // pred_check_branch
      %59 = sbr.rel (0) target = $region33
    $region32: #{tpu_custom_call.1} parent=1 // pred_region
      %60 = dma.done [#allocation4], 128
    $region33: #{tpu_custom_call.1} parent=1 // pred_fallthru
      _
    // Predicated region
    $region34: #{tpu_custom_call.1} parent=1 // pred_check
      _
    $region35: #{tpu_custom_call.1} parent=1 // pred_check_branch
      %62 = sbr.rel (0) target = $region37
    $region36: #{tpu_custom_call.1} parent=1 // pred_region
      %63 = dma.done [#allocation6], 256
    $region37: #{tpu_custom_call.1} parent=1 // pred_fallthru
      _
    // Predicated region
    $region38: #{tpu_custom_call.1} parent=1 // pred_check
      _
    $region39: #{tpu_custom_call.1} parent=1 // pred_check_branch
      %65 = sbr.rel (0) target = $region41
    $region40: #{tpu_custom_call.1} parent=1 // pred_region
      %66 = dma.done [#allocation6], 1024
    $region41: #{tpu_custom_call.1} parent=1 // pred_fallthru
      _
    %v68 = vld [vmem:[#allocation3] sm:$0xff]
    %v69 = vpack.c.bf16 %v68, %v68
    %v70 = vld [vmem:[#allocation5] sm:$0xf]
    %v71 = vld [vmem:[#allocation5 + $0x4] sm:$0xf]
    %v72 = vld [vmem:[#allocation5 + $0x8] sm:$0xf]
    %v73 = vld [vmem:[#allocation5 + $0xc] sm:$0xf]
    %v74 = vld [vmem:[%s2] sm:$0x1]
    %v76 = vlaneseq
    %v77 = vshrl.u32 %v76, 7
    %v78 = vsub.s32 0, %v77
    %v79 = vrot.slane %v74, %v78
    %v85 = vunpack.c.l.b16 %v70
    %v86 = vunpack.c.l.b16 %v71
    %v87 = vunpack.c.l.b16 %v72
    %v88 = vunpack.c.l.b16 %v73
    %v89 = vpack.c.b16 %v86, %v85
    %v90 = vpack.c.b16 %v88, %v87
    %vm93 = vcmask 261120
    %v95 = vsel %vm93, %v69, 0
    %97 = vmatprep.subr.bf16.mxu0 0
    %98 = vmatpush1.bf16.msra.mxu0 %v89
    %99 = vmatprep.subr.bf16.mxu0 0
    %100 = vmatpush1.bf16.msra.mxu0 %v90
    %101 = vmatprep.subr.bf16.mxu0 0
    %102 = vmatpush1.bf16.msra.mxu0 0
    %103 = vmatprep.subr.bf16.mxu0 0
    %104 = vmatpush1.bf16.msra.mxu0 0
    %105 = vmatprep.subr.bf16.mxu0 0
    %106 = vmatpush1.bf16.msra.mxu0 0
    %107 = vmatprep.subr.bf16.mxu0 0
    %108 = vmatpush1.bf16.msra.mxu0 0
    %109 = vmatprep.subr.bf16.mxu0 0
    %110 = vmatpush1.bf16.msra.mxu0 0
    %111 = vmatprep.subr.bf16.mxu0 0
    %112 = vmatpush1.bf16.msra.mxu0 0
    %113 = vmatprep.subr.bf16.mxu0 0
    %114 = vmatpush1.bf16.msra.mxu0 0
    %115 = vmatprep.subr.bf16.mxu0 0
    %116 = vmatpush1.bf16.msra.mxu0 0
    %117 = vmatprep.subr.bf16.mxu0 0
    %118 = vmatpush1.bf16.msra.mxu0 0
    %119 = vmatprep.subr.bf16.mxu0 0
    %120 = vmatpush1.bf16.msra.mxu0 0
    %121 = vmatprep.subr.bf16.mxu0 0
    %122 = vmatpush1.bf16.msra.mxu0 0
    %123 = vmatprep.subr.bf16.mxu0 0
    %124 = vmatpush1.bf16.msra.mxu0 0
    %125 = vmatprep.subr.bf16.mxu0 0
    %126 = vmatpush1.bf16.msra.mxu0 0
    %127 = vmatprep.subr.bf16.mxu0 0
    %128 = vmatpush1.bf16.msra.mxu0 0
    %129 = vmatprep.mubr.bf16.mxu0 0
    %130 = vmatmul.mubr.bf16.gmra.mrb[0].mxu0 %v95
    %v131 = vpop.f32.mrb[0].mxu0
    %v132 = vadd.f32 %v79, %v131
    %v133 = vpop.f32.mrb[0].mxu0
    %v134 = vpop.f32.mrb[0].mxu0
    %v135 = vpop.f32.mrb[0].mxu0
    %136 = vdwg.mxu0
    %v137 = vmax.f32 %v132, 0.0
    %v138 = vpack.c.bf16 %v137, %v137
    %v139 = vld [vmem:[#allocation7] sm:$0xf]
    %v140 = vld [vmem:[#allocation7 + $0x4] sm:$0xf]
    %v141 = vld [vmem:[#allocation7 + $0x8] sm:$0xf]
    %v142 = vld [vmem:[#allocation7 + $0xc] sm:$0xf]
    %v143 = vld [vmem:[#allocation7 + $0x10] sm:$0xf]
    %v144 = vld [vmem:[#allocation7 + $0x14] sm:$0xf]
    %v145 = vld [vmem:[#allocation7 + $0x18] sm:$0xf]
    %v146 = vld [vmem:[#allocation7 + $0x1c] sm:$0xf]
    %v147 = vld [vmem:[#allocation7 + $0x20] sm:$0xf]
    %v148 = vld [vmem:[#allocation7 + $0x24] sm:$0xf]
    %v149 = vld [vmem:[#allocation7 + $0x28] sm:$0xf]
    %v150 = vld [vmem:[#allocation7 + $0x2c] sm:$0xf]
    %v151 = vld [vmem:[#allocation7 + $0x30] sm:$0xf]
    %v152 = vld [vmem:[#allocation7 + $0x34] sm:$0xf]
    %v153 = vld [vmem:[#allocation7 + $0x38] sm:$0xf]
    %v154 = vld [vmem:[#allocation7 + $0x3c] sm:$0xf]
    %v155 = vld [vmem:[%s4] sm:$0x1]
    %v157 = vlaneseq
    %v158 = vshrl.u32 %v157, 7
    %v159 = vsub.s32 0, %v158
    %v160 = vrot.slane %v155, %v159
    %v178 = vunpack.c.l.b16 %v139
    %v179 = vunpack.c.l.b16 %v140
    %v180 = vunpack.c.l.b16 %v141
    %v181 = vunpack.c.l.b16 %v142
    %v182 = vunpack.c.l.b16 %v143
    %v183 = vunpack.c.l.b16 %v144
    %v184 = vunpack.c.l.b16 %v145
    %v185 = vunpack.c.l.b16 %v146
    %v186 = vunpack.c.l.b16 %v147
    %v187 = vunpack.c.l.b16 %v148
    %v188 = vunpack.c.l.b16 %v149
    %v189 = vunpack.c.l.b16 %v150
    %v190 = vunpack.c.l.b16 %v151
    %v191 = vunpack.c.l.b16 %v152
    %v192 = vunpack.c.l.b16 %v153
    %v193 = vunpack.c.l.b16 %v154
    %v194 = vpack.c.b16 %v179, %v178
    %v195 = vpack.c.b16 %v181, %v180
    %v196 = vpack.c.b16 %v183, %v182
    %v197 = vpack.c.b16 %v185, %v184
    %v198 = vpack.c.b16 %v187, %v186
    %v199 = vpack.c.b16 %v189, %v188
    %v200 = vpack.c.b16 %v191, %v190
    %v201 = vpack.c.b16 %v193, %v192
    %210 = vmatprep.subr.bf16.mxu0 0
    %211 = vmatpush1.bf16.msra.mxu0 %v194
    %212 = vmatprep.subr.bf16.mxu0 0
    %213 = vmatpush1.bf16.msra.mxu0 %v195
    %214 = vmatprep.subr.bf16.mxu0 0
    %215 = vmatpush1.bf16.msra.mxu0 %v196
    %216 = vmatprep.subr.bf16.mxu0 0
    %217 = vmatpush1.bf16.msra.mxu0 %v197
    %218 = vmatprep.subr.bf16.mxu0 0
    %219 = vmatpush1.bf16.msra.mxu0 %v198
    %220 = vmatprep.subr.bf16.mxu0 0
    %221 = vmatpush1.bf16.msra.mxu0 %v199
    %222 = vmatprep.subr.bf16.mxu0 0
    %223 = vmatpush1.bf16.msra.mxu0 %v200
    %224 = vmatprep.subr.bf16.mxu0 0
    %225 = vmatpush1.bf16.msra.mxu0 %v201
    %226 = vmatprep.subr.bf16.mxu0 0
    %227 = vmatpush1.bf16.msra.mxu0 0
    %228 = vmatprep.subr.bf16.mxu0 0
    %229 = vmatpush1.bf16.msra.mxu0 0
    %230 = vmatprep.subr.bf16.mxu0 0
    %231 = vmatpush1.bf16.msra.mxu0 0
    %232 = vmatprep.subr.bf16.mxu0 0
    %233 = vmatpush1.bf16.msra.mxu0 0
    %234 = vmatprep.subr.bf16.mxu0 0
    %235 = vmatpush1.bf16.msra.mxu0 0
    %236 = vmatprep.subr.bf16.mxu0 0
    %237 = vmatpush1.bf16.msra.mxu0 0
    %238 = vmatprep.subr.bf16.mxu0 0
    %239 = vmatpush1.bf16.msra.mxu0 0
    %240 = vmatprep.subr.bf16.mxu0 0
    %241 = vmatpush1.bf16.msra.mxu0 0
    %242 = vmatprep.mubr.bf16.mxu0 0
    %243 = vmatmul.mubr.bf16.gmra.mrb[0].mxu0 %v138
    %v244 = vpop.f32.mrb[0].mxu0
    %v245 = vadd.f32 %v160, %v244
    %v246 = vpop.f32.mrb[0].mxu0
    %v247 = vpop.f32.mrb[0].mxu0
    %v248 = vpop.f32.mrb[0].mxu0
    %249 = vdwg.mxu0
    %v250 = vmax.f32 %v245, 0.0
    %v251 = vld [vmem:[%s5] sm:$0x1]
    %v253 = vlaneseq
    %v254 = vshrl.u32 %v253, 7
    %v255 = vsub.s32 0, %v254
    %v256 = vrot.slane %v251, %v255
    %v258 = vmul.f32 %v250, %v256
    %259 = vadd.xlane.f32.xlu0 %v258
    %v260 = vpop.xlane.xlu0 %259
    %v261 = vld [vmem:[#allocation2] sm:$0x1]
    %v263 = vlaneseq
    %v264 = vshrl.u32 %v263, 7
    %v265 = vsub.s32 0, %v264
    %v266 = vrot.slane %v261, %v265
    %v268 = vadd.f32 %v260, %v266
    %v269 = vxor.u32 %v268, 2147483648
    %v270 = vmul.f32 %v269, 1.442695
    %v271 = vpow.pop %v270
    %v272 = vadd.f32 %v271, 1.0
    %v273 = vrcp.pop %v272
    %v274 = vmul.f32 1.0, %v273
    %vm275 = vcmask 7168
    %276 = vst.msk [vmem:[%s7] sm:$0xff] %vm275, %v274
    // Predicated region
    $region42: #{tpu_custom_call.1} parent=1 // pred_check
      _
    $region43: #{tpu_custom_call.1} parent=1 // pred_check_branch
      %278 = sbr.rel (0) target = $region45
    $region44: #{tpu_custom_call.1} parent=1 // pred_region
      _
    $region45: #{tpu_custom_call.1} parent=1 // pred_fallthru
      _
    // Predicated region
    $region46: #{tpu_custom_call.1} parent=1 // pred_check
      _
    $region47: #{tpu_custom_call.1} parent=1 // pred_check_branch
      %280 = sbr.rel (0) target = $region49
    $region48: #{tpu_custom_call.1} parent=1 // pred_region
      _
    $region49: #{tpu_custom_call.1} parent=1 // pred_fallthru
      _
    %281 = vsyncpa [#allocation4], 1
    %282 = vsyncpa [#allocation6], 1

</llo_original>
